<compile_context>
chip_gen: v7x
topology: tpu7x:2x2x1
jax: 0.10.0
libtpu: 0.0.40
codegen_flags: <defaults>
</compile_context>

<pallas_src>
import functools
import math

import jax
import jax.numpy as jnp
from jax.experimental import pallas as pl
from jax.experimental.pallas import tpu as pltpu


def _ace_kernel(x_ref, label_ref, out_ref, acc_ref, *, tl, fold, t_total):
    # x_ref:     (bT, t_tile, cl)  native-dtype spatial block (cl = fold * C)
    # label_ref: (bT, 1, C)        f32 per-class count targets
    # out_ref:   (bT, 1, 128)      f32 per-batch loss contribution (lane-broadcast)
    # acc_ref:   (bT, 8, cl)       f32 running (folded) per-class partial sums
    t = pl.program_id(1)
    n_t = pl.num_programs(1)

    @pl.when(t == 0)
    def _init():
        acc_ref[...] = jnp.zeros_like(acc_ref)

    x = x_ref[...].astype(jnp.float32)        # cast hidden under the DMA stream
    b_t, rows, cl = x.shape

    # Mask ragged tail rows (only emitted when t_tile does not divide tl).
    if tl % rows != 0:
        row_ids = jax.lax.broadcasted_iota(jnp.int32, x.shape, 1)
        x = jnp.where(row_ids + t * rows < tl, x, jnp.float32(0.0))

    # Accumulate into 8 sublanes; cross-sublane (XLU) reduce deferred to finalize.
    if rows % 8 == 0:
        if rows == 8:
            acc_ref[...] += x
        else:
            acc_ref[...] += jnp.sum(x.reshape(b_t, rows // 8, 8, cl), axis=1)
    else:
        acc_ref[:, 0:1, :] += jnp.sum(x, axis=1, keepdims=True)

    @pl.when(t == n_t - 1)
    def _finalize():
        s = jnp.sum(acc_ref[...], axis=1)                # (bT, cl): fold sublanes
        c = label_ref.shape[-1]
        class_sum = s[:, 0:c]
        for j in range(1, fold):                         # combine the lane folds
            class_sum = class_sum + s[:, j * c:(j + 1) * c]
        t_f = jnp.float32(t_total)
        p = class_sum / t_f + jnp.float32(1e-10)         # epsilon hoisted
        lbl = label_ref[...][:, 0, :] / t_f              # (bT, C)
        contrib = -jnp.sum(jnp.log(p) * lbl, axis=-1, keepdims=True)   # (bT, 1)
        out_ref[...] = jnp.broadcast_to(
            contrib[:, :, None], out_ref.shape).astype(out_ref.dtype)


def ace_loss(inp, label, *, max_tile_bytes=8 * 1024 * 1024):
    """inp: (bs, h, w, C) any float dtype, label: (bs, C) -> scalar f32 loss."""
    bs, h, w, c = inp.shape
    t_total = h * w
    itemsize = jnp.dtype(inp.dtype).itemsize
    sub = max(8, 32 // itemsize)       # sublane alignment: 8 f32, 16 bf16, 32 int8/fp8

    # Lane-dense fold: pack `fold` spatial positions into the 128-lane axis so the
    # streamed block's last dim is a multiple of 128 whenever t_total allows.
    fold = 128 // math.gcd(c, 128)
    if fold > 1 and t_total % fold != 0:
        fold = 1
    cl = fold * c
    tl = t_total // fold

    x = inp.reshape(bs, tl, cl)        # contiguous reshape; native dtype on the wire
    label3 = label.astype(jnp.float32).reshape(bs, 1, c)

    # Fixed, sublane-aligned spatial tile; ragged tail masked inside the kernel.
    row_bytes = cl * itemsize
    max_rows = max(sub, (max_tile_bytes // row_bytes) // sub * sub)
    t_tile = tl if tl <= max_rows else max_rows
    n_t = pl.cdiv(tl, t_tile)

    # Batch blocking: when the per-batch spatial block is small, stream several
    # batches per grid step so each step stays MB-scale (amortizes step overhead).
    block_bytes = t_tile * row_bytes
    b_tile = 1
    if block_bytes < max_tile_bytes:
        target = min(bs, 256, max(1, max_tile_bytes // max(block_bytes, 1)))
        for d in range(target, 0, -1):
            if bs % d == 0:
                b_tile = d
                break
    n_b = bs // b_tile

    # VMEM budget: double-buffered input block + accumulator + small label/out.
    in_block_bytes = b_tile * t_tile * cl * itemsize
    acc_bytes = b_tile * 8 * cl * 4
    vmem_limit = int(min(100 * 1024 * 1024,
                         max(32 * 1024 * 1024,
                             2 * in_block_bytes + acc_bytes + (1 << 20))))

    kernel = functools.partial(_ace_kernel, tl=tl, fold=fold, t_total=t_total)

    out = pl.pallas_call(
        kernel,
        out_shape=jax.ShapeDtypeStruct((bs, 1, 128), jnp.float32),
        grid_spec=pltpu.PrefetchScalarGridSpec(
            num_scalar_prefetch=0,
            grid=(n_b, n_t),
            in_specs=[
                pl.BlockSpec((b_tile, t_tile, cl), lambda b, t: (b, t, 0)),
                pl.BlockSpec((b_tile, 1, c), lambda b, t: (b, 0, 0)),
            ],
            out_specs=pl.BlockSpec((b_tile, 1, 128), lambda b, t: (b, 0, 0)),
            scratch_shapes=[pltpu.VMEM((b_tile, 8, cl), jnp.float32)],
        ),
        compiler_params=pltpu.CompilerParams(
            dimension_semantics=("parallel", "arbitrary"),
            vmem_limit_bytes=vmem_limit,
        ),
        cost_estimate=pl.CostEstimate(
            flops=bs * t_total * c + 4 * bs * c,
            transcendentals=bs * c,
            bytes_accessed=bs * t_total * c * itemsize + bs * c * 4 + bs * 128 * 4,
        ),
    )(x, label3)

    return jnp.sum(out[:, 0, 0]) / jnp.float32(bs)


def _ace_ref(inp, label):
    bs, h, w, c = inp.shape
    t_total = h * w
    x = inp.reshape(bs, t_total, c).astype(jnp.float32) + 1e-10
    p = jnp.sum(x, axis=1) / t_total
    lbl = label.astype(jnp.float32) / t_total
    return -jnp.sum(jnp.log(p) * lbl) / bs


if __name__ == "__main__":
    key = jax.random.PRNGKey(0)

    def make_inputs(k, bs, h, w, c):
        k1, k2 = jax.random.split(k)
        logits = jax.random.normal(k1, (bs, h, w, c), dtype=jnp.float32)
        probs = jax.nn.softmax(logits, axis=-1)     # ACE expects softmax output
        raw = jax.random.uniform(k2, (bs, c), dtype=jnp.float32)
        lbl = raw / jnp.sum(raw, axis=-1, keepdims=True) * (h * w)  # per-class counts
        return probs, lbl

    k1, k2, k3 = jax.random.split(key, 3)

    # Case 1: basic small shape (single spatial tile, batch-blocked, fold=4).
    inp, label = make_inputs(k1, 2, 4, 4, 32)
    loss = ace_loss(inp, label)
    jax.block_until_ready(loss)
    ref = _ace_ref(inp, label)
    assert jnp.allclose(loss, ref, rtol=1e-5, atol=1e-6), (loss, ref)

    # Case 2: forces spatial tiling with a ragged tail (tl=24, t_tile=16, n_t=2).
    inp, label = make_inputs(k2, 2, 8, 12, 32)
    loss = ace_loss(inp, label, max_tile_bytes=8 * 1024)
    jax.block_until_ready(loss)
    ref = _ace_ref(inp, label)
    assert jnp.allclose(loss, ref, rtol=1e-5, atol=1e-6), (loss, ref)

    # Case 3: odd class count / spatial size (no lane fold, unaligned rows).
    inp, label = make_inputs(k3, 2, 3, 5, 7)
    loss = ace_loss(inp, label)
    jax.block_until_ready(loss)
    ref = _ace_ref(inp, label)
    assert jnp.allclose(loss, ref, rtol=1e-5, atol=1e-6), (loss, ref)

    print("KERNEL_OK")
</pallas_src>

<mosaic_0001>
module attributes {stable_mosaic.version = 11 : i64} {
  func.func @_ace_kernel(%arg0: i32, %arg1: i32, %arg2: memref<2x4x128xf32, #tpu.memory_space<vmem>>, %arg3: memref<2x1x32xf32, #tpu.memory_space<vmem>>, %arg4: memref<2x1x128xf32, #tpu.memory_space<vmem>>, %arg5: memref<2x8x128xf32, #tpu.memory_space<vmem>>) attributes {dimension_semantics = [#tpu.dimension_semantics<parallel>, #tpu.dimension_semantics<arbitrary>], iteration_bounds = array<i64: 1, 1>, scalar_prefetch = 0 : i64, scratch_operands = 1 : i64, tpu.core_type = #tpu.core_type<tc>, window_params = [{transform_indices = @transform_0, window_bounds = array<i64: 2, 4, 128>}, {transform_indices = @transform_1, window_bounds = array<i64: 2, 1, 32>}, {transform_indices = @transform_2, window_bounds = array<i64: 2, 1, 128>}]} {
    %c0_i32 = arith.constant 0 : i32
    %0 = arith.cmpi eq, %arg1, %c0_i32 : i32
    %1 = arith.extui %0 : i1 to i32
    %c0_i32_0 = arith.constant 0 : i32
    %2 = arith.cmpi ne, %1, %c0_i32_0 : i32
    scf.if %2 {
      %cst_11 = arith.constant 0.000000e+00 : f32
      %12 = vector.broadcast %cst_11 : f32 to vector<2x8x128xf32>
      %c0_12 = arith.constant 0 : index
      %c0_13 = arith.constant 0 : index
      %c0_14 = arith.constant 0 : index
      %13 = vector.load %arg5[%c0_12, %c0_13, %c0_14] : memref<2x8x128xf32, #tpu.memory_space<vmem>>, vector<2x8x128xf32>
      tpu.vector_store %arg5[%c0_12, %c0_13, %c0_14], %12 {strides = array<i32>} : memref<2x8x128xf32, #tpu.memory_space<vmem>>, vector<2x8x128xf32>,
    } else {
    }
    %c0 = arith.constant 0 : index
    %c0_1 = arith.constant 0 : index
    %c0_2 = arith.constant 0 : index
    %3 = vector.load %arg2[%c0, %c0_1, %c0_2] : memref<2x4x128xf32, #tpu.memory_space<vmem>>, vector<2x4x128xf32>
    %c0_3 = arith.constant 0 : index
    %c0_4 = arith.constant 0 : index
    %c0_5 = arith.constant 0 : index
    %4 = vector.load %arg5[%c0_3, %c0_4, %c0_5] : memref<2x8x128xf32, #tpu.memory_space<vmem>>, vector<2x1x128xf32>
    %cst = arith.constant dense<0.000000e+00> : vector<2x128xf32>
    %5 = vector.multi_reduction <add>, %3, %cst [1] : vector<2x4x128xf32> to vector<2x128xf32>
    %6 = vector.shape_cast %5 : vector<2x128xf32> to vector<2x1x128xf32>
    %7 = arith.addf %4, %6 : vector<2x1x128xf32>
    %c0_6 = arith.constant 0 : index
    %c0_7 = arith.constant 0 : index
    %c0_8 = arith.constant 0 : index
    %8 = vector.load %arg5[%c0_6, %c0_7, %c0_8] : memref<2x8x128xf32, #tpu.memory_space<vmem>>, vector<2x1x128xf32>
    tpu.vector_store %arg5[%c0_6, %c0_7, %c0_8], %7 {strides = array<i32>} : memref<2x8x128xf32, #tpu.memory_space<vmem>>, vector<2x1x128xf32>,
    %c0_i32_9 = arith.constant 0 : i32
    %9 = arith.cmpi eq, %arg1, %c0_i32_9 : i32
    %10 = arith.extui %9 : i1 to i32
    %c0_i32_10 = arith.constant 0 : i32
    %11 = arith.cmpi ne, %10, %c0_i32_10 : i32
    scf.if %11 {
      %c0_11 = arith.constant 0 : index
      %c0_12 = arith.constant 0 : index
      %c0_13 = arith.constant 0 : index
      %12 = vector.load %arg5[%c0_11, %c0_12, %c0_13] : memref<2x8x128xf32, #tpu.memory_space<vmem>>, vector<2x8x128xf32>
      %cst_14 = arith.constant dense<0.000000e+00> : vector<2x128xf32>
      %13 = vector.multi_reduction <add>, %12, %cst_14 [1] : vector<2x8x128xf32> to vector<2x128xf32>
      %14 = vector.extract_strided_slice %13 {offsets = [0, 0], sizes = [2, 32], strides = [1, 1]} : vector<2x128xf32> to vector<2x32xf32>
      %15 = vector.extract_strided_slice %13 {offsets = [0, 32], sizes = [2, 32], strides = [1, 1]} : vector<2x128xf32> to vector<2x32xf32>
      %16 = arith.addf %14, %15 : vector<2x32xf32>
      %17 = vector.extract_strided_slice %13 {offsets = [0, 64], sizes = [2, 32], strides = [1, 1]} : vector<2x128xf32> to vector<2x32xf32>
      %18 = arith.addf %16, %17 : vector<2x32xf32>
      %19 = vector.extract_strided_slice %13 {offsets = [0, 96], sizes = [2, 32], strides = [1, 1]} : vector<2x128xf32> to vector<2x32xf32>
      %20 = arith.addf %18, %19 : vector<2x32xf32>
      %cst_15 = arith.constant 1.600000e+01 : f32
      %21 = vector.broadcast %cst_15 : f32 to vector<2x32xf32>
      %22 = arith.divf %20, %21 : vector<2x32xf32>
      %cst_16 = arith.constant 1.000000e-10 : f32
      %23 = vector.broadcast %cst_16 : f32 to vector<2x32xf32>
      %24 = arith.addf %22, %23 : vector<2x32xf32>
      %c0_17 = arith.constant 0 : index
      %c0_18 = arith.constant 0 : index
      %c0_19 = arith.constant 0 : index
      %25 = vector.load %arg3[%c0_17, %c0_18, %c0_19] : memref<2x1x32xf32, #tpu.memory_space<vmem>>, vector<2x1x32xf32>
      %26 = vector.shape_cast %25 : vector<2x1x32xf32> to vector<2x32xf32>
      %cst_20 = arith.constant 1.600000e+01 : f32
      %27 = vector.broadcast %cst_20 : f32 to vector<2x32xf32>
      %28 = arith.divf %26, %27 : vector<2x32xf32>
      %29 = math.log %24 : vector<2x32xf32>
      %30 = arith.mulf %29, %28 : vector<2x32xf32>
      %cst_21 = arith.constant dense<0.000000e+00> : vector<2xf32>
      %31 = vector.multi_reduction <add>, %30, %cst_21 [1] : vector<2x32xf32> to vector<2xf32>
      %32 = vector.shape_cast %31 : vector<2xf32> to vector<2x1xf32>
      %cst_22 = arith.constant 0.000000e+00 : f32
      %33 = vector.broadcast %cst_22 : f32 to vector<2x1xf32>
      %34 = arith.subf %33, %32 : vector<2x1xf32>
      %35 = vector.shape_cast %34 : vector<2x1xf32> to vector<2x1x1xf32>
      %36 = vector.shape_cast %35 : vector<2x1x1xf32> to vector<2x1x1xf32>
      %37 = vector.broadcast %36 : vector<2x1x1xf32> to vector<2x1x128xf32>
      %c0_23 = arith.constant 0 : index
      %c0_24 = arith.constant 0 : index
      %c0_25 = arith.constant 0 : index
      %38 = vector.load %arg4[%c0_23, %c0_24, %c0_25] : memref<2x1x128xf32, #tpu.memory_space<vmem>>, vector<2x1x128xf32>
      tpu.vector_store %arg4[%c0_23, %c0_24, %c0_25], %37 {strides = array<i32>} : memref<2x1x128xf32, #tpu.memory_space<vmem>>, vector<2x1x128xf32>,
    } else {
    }
    return
  }
  func.func @transform_0(%arg0: i32, %arg1: i32) -> (i32, i32, i32) {
    %c0_i32 = arith.constant 0 : i32
    %c0_i32_0 = arith.constant 0 : i32
    return %arg0, %arg1, %c0_i32 : i32, i32, i32
  }
  func.func @transform_1(%arg0: i32, %arg1: i32) -> (i32, i32, i32) {
    %c0_i32 = arith.constant 0 : i32
    %c0_i32_0 = arith.constant 0 : i32
    %c0_i32_1 = arith.constant 0 : i32
    return %arg0, %c0_i32, %c0_i32_0 : i32, i32, i32
  }
  func.func @transform_2(%arg0: i32, %arg1: i32) -> (i32, i32, i32) {
    %c0_i32 = arith.constant 0 : i32
    %c0_i32_0 = arith.constant 0 : i32
    %c0_i32_1 = arith.constant 0 : i32
    return %arg0, %c0_i32, %c0_i32_0 : i32, i32, i32
  }
}

</mosaic_0001>

<llo_original>
// kernel: tpu_custom_call.1
$region0: #{tpu_custom_call.1}
  #allocation0 [shape = 'u32[]', space=smem, size = 0x4, offset = 0x4, fixed_abs, tag = 'smem constant byte address 0x4 - core index']
  #allocation1 [shape = 'u32[144,128]{1,0:T(1,128)}', space=vmem, size = 0x12000, scoped, tag = 'internal scratch']
  #allocation2 [shape = 'f32[2,8,128]{2,1,0:T(8,128)}', space=vmem, size = 0x2000, scoped, tag = 'scratch operand']
  %s0 = inlined_call_operand.hbm [shape: f32[2,4,128], index: 0, kind: input, shape index: {}]
  %s1 = inlined_call_operand.vmem [shape: f32[2,1,32], index: 1, kind: input, shape index: {}]
  %s2 = inlined_call_operand.hbm [shape: f32[2,1,128], index: 2, kind: output, shape index: {}]
  %s3 = sld [smem:[#allocation0]]
  $region30: #{tpu_custom_call.1} parent=0
    _
  %s5 = ssub.s32 1, %s3
  %s6 = scalar_select 0, %s5, %s3
  $region1: #{tpu_custom_call.1} parent=0
    #allocation3 [shape = 'u8[4096]{0}', space=vmem, size = 0x1000, scoped, tag = 'input window, operand 0, single buffered']
    #allocation4 [shape = 's32[1]{0}', space=sflag, size = 0x4, scoped, tag = 'scoped memory for tpu_custom_call.1']
    #allocation5 [shape = 's32[1]{0}', space=sflag, size = 0x4, scoped, tag = 'scoped memory for tpu_custom_call.1']
    #allocation6 [shape = 'u8[1024]{0}', space=vmem, size = 0x400, scoped, tag = 'output window, operand 0, single buffered']
    %7 = vsyncpa [#allocation4], 0
    %8 = vsyncpa [#allocation5], 0
    // Predicated region
    $region2: #{tpu_custom_call.1} parent=1 // pred_check
      _
    $region3: #{tpu_custom_call.1} parent=1 // pred_check_branch
      %10 = sbr.rel (0) target = $region5
    $region4: #{tpu_custom_call.1} parent=1 // pred_region
      %s12 = ssub.s32 128, 128
      %13 = vsyncadd [#allocation4], %s12
      %s14 = sshll.u32 [#allocation3], 4
      %s15 = int_to_ptr.vmem [resolvable:$true] %s14
      %20 = dma.hbm_to_vmem [thread:$0]  %s0, 128, %s15, [#allocation4], 64, 64, 4
    $region5: #{tpu_custom_call.1} parent=1 // pred_fallthru
      _
    // Predicated region
    $region6: #{tpu_custom_call.1} parent=1 // pred_check
      _
    $region7: #{tpu_custom_call.1} parent=1 // pred_check_branch
      %22 = sbr.rel (0) target = $region9
    $region8: #{tpu_custom_call.1} parent=1 // pred_region
      _
    $region9: #{tpu_custom_call.1} parent=1 // pred_fallthru
      _
    // Predicated region
    $region10: #{tpu_custom_call.1} parent=1 // pred_check
      _
    $region11: #{tpu_custom_call.1} parent=1 // pred_check_branch
      %24 = sbr.rel (0) target = $region13
    $region12: #{tpu_custom_call.1} parent=1 // pred_region
      %25 = dma.done [#allocation4], 128
    $region13: #{tpu_custom_call.1} parent=1 // pred_fallthru
      _
    %p26 = scmp.eq.s32.totalorder 0, 0
    // Predicated region
    $region14: #{tpu_custom_call.1} parent=1 // pred_check
      %p27 = pneg %p26
    $region15: #{tpu_custom_call.1} parent=1 // pred_check_branch
      %29 = sbr.rel (%p27) target = $region17
    $region16: #{tpu_custom_call.1} parent=1 // pred_region
      %30 = vst [vmem:[#allocation2] sm:$0xff] 0.0
      %31 = vst [vmem:[#allocation2 + $0x8] sm:$0xff] 0.0
    $region17: #{tpu_custom_call.1} parent=1 // pred_fallthru
      _
    %v32 = vld [vmem:[#allocation3] sm:$0xf]
    %v33 = vld [vmem:[#allocation3 + $0x4] sm:$0xf]
    %v34 = vld [vmem:[#allocation2] sm:$0x1]
    %v35 = vld [vmem:[#allocation2 + $0x8] sm:$0x1]
    %vm36 = vcmask 1043456
    %v37 = vsel %vm36, %v32, 0.0
    %v38 = vrot.slane %v37, 4
    %v39 = vadd.f32 %v37, %v38
    %v40 = vrot.slane %v39, 2
    %v41 = vadd.f32 %v39, %v40
    %v42 = vrot.slane %v41, 1
    %v43 = vadd.f32 %v41, %v42
    %v44 = vsel %vm36, %v33, 0.0
    %v45 = vrot.slane %v44, 4
    %v46 = vadd.f32 %v44, %v45
    %v47 = vrot.slane %v46, 2
    %v48 = vadd.f32 %v46, %v47
    %v49 = vrot.slane %v48, 1
    %v50 = vadd.f32 %v48, %v49
    %v51 = vadd.f32 %v34, %v43
    %v52 = vadd.f32 %v35, %v50
    %53 = vst [vmem:[#allocation2] sm:$0x1] %v51
    %54 = vst [vmem:[#allocation2 + $0x8] sm:$0x1] %v52
    // Predicated region
    $region18: #{tpu_custom_call.1} parent=1 // pred_check
      %p55 = pneg %p26
    $region19: #{tpu_custom_call.1} parent=1 // pred_check_branch
      %57 = sbr.rel (%p55) target = $region21
    $region20: #{tpu_custom_call.1} parent=1 // pred_region
      %v58 = vld [vmem:[#allocation2] sm:$0xff]
      %v59 = vld [vmem:[#allocation2 + $0x8] sm:$0xff]
      %v60 = vrot.slane %v58, 4
      %v61 = vadd.f32 %v58, %v60
      %v62 = vrot.slane %v61, 2
      %v63 = vadd.f32 %v61, %v62
      %v64 = vrot.slane %v63, 1
      %v65 = vadd.f32 %v63, %v64
      %v66 = vrot.slane %v59, 4
      %v67 = vadd.f32 %v59, %v66
      %v68 = vrot.slane %v67, 2
      %v69 = vadd.f32 %v67, %v68
      %v70 = vrot.slane %v69, 1
      %v71 = vadd.f32 %v69, %v70
      %74 = vrot.lane.b32.xlu0 %v65, 96
      %v75 = vpop.permute.xlu0 %74
      %76 = vrot.lane.b32.xlu0 %v71, 96
      %v77 = vpop.permute.xlu0 %76
      %v80 = vadd.f32 %v65, %v75
      %v81 = vadd.f32 %v71, %v77
      %82 = vrot.lane.b32.xlu0 %v65, 64
      %v83 = vpop.permute.xlu0 %82
      %84 = vrot.lane.b32.xlu0 %v71, 64
      %v85 = vpop.permute.xlu0 %84
      %v88 = vadd.f32 %v80, %v83
      %v89 = vadd.f32 %v81, %v85
      %90 = vrot.lane.b32.xlu0 %v65, 32
      %v91 = vpop.permute.xlu0 %90
      %92 = vrot.lane.b32.xlu0 %v71, 32
      %v93 = vpop.permute.xlu0 %92
      %v96 = vadd.f32 %v88, %v91
      %v97 = vadd.f32 %v89, %v93
      %v98 = vrcp.pop 16.0
      %v99 = vmul.f32 %v96, %v98
      %v100 = vmul.f32 %v97, %v98
      %v101 = vadd.f32 %v99, 1e-10
      %v102 = vadd.f32 %v100, 1e-10
      %v103 = vld [vmem:[%s1] sm:$0x1]
      %v104 = vld [vmem:[%s1 + $0x1] sm:$0x1]
      %v105 = vmul.f32 %v103, %v98
      %v106 = vmul.f32 %v104, %v98
      %v107 = vlog2.pop %v101
      %v108 = vmul.f32 %v107, 0.6931472
      %v109 = vlog2.pop %v102
      %v110 = vmul.f32 %v109, 0.6931472
      %v111 = vmul.f32 %v108, %v105
      %v112 = vmul.f32 %v110, %v106
      %v115 = vrot.slane %v112, 7
      %vm116 = vcmask 1041409
      %v117 = vsel %vm116, %v115, %v111
      %vm119 = vcmask 254976
      %v120 = vsel %vm119, %v117, 0.0
      %121 = vadd.xlane.f32.xlu0 %v120
      %v122 = vpop.xlane.xlu0 %121
      %v123 = vsub.f32 0.0, %v122
      %v125 = vlaneseq
      %v126 = vshrl.u32 %v125, 7
      %v127 = vsub.s32 0, %v126
      %v128 = vrot.slane %v123, %v127
      %v129 = vlaneseq
      %v130 = vshrl.u32 %v129, 7
      %v131 = vsub.s32 1, %v130
      %v132 = vrot.slane %v123, %v131
      %135 = vst [vmem:[#allocation6] sm:$0x1] %v128
      %136 = vst [vmem:[#allocation6 + $0x1] sm:$0x1] %v132
    $region21: #{tpu_custom_call.1} parent=1 // pred_fallthru
      _
    // Predicated region
    $region22: #{tpu_custom_call.1} parent=1 // pred_check
      _
    $region23: #{tpu_custom_call.1} parent=1 // pred_check_branch
      %138 = sbr.rel (0) target = $region25
    $region24: #{tpu_custom_call.1} parent=1 // pred_region
      %s140 = ssub.s32 32, 32
      %141 = vsyncadd [#allocation5], %s140
      %s142 = sshll.u32 [#allocation6], 4
      %s143 = int_to_ptr.vmem [resolvable:$true] %s142
      %148 = dma.vmem_to_hbm [thread:$0]  %s143, 32, %s2, [#allocation5], 16, 16, 1
    $region25: #{tpu_custom_call.1} parent=1 // pred_fallthru
      _
    // Predicated region
    $region26: #{tpu_custom_call.1} parent=1 // pred_check
      _
    $region27: #{tpu_custom_call.1} parent=1 // pred_check_branch
      %150 = sbr.rel (0) target = $region29
    $region28: #{tpu_custom_call.1} parent=1 // pred_region
      %151 = dma.done [#allocation5], 32
    $region29: #{tpu_custom_call.1} parent=1 // pred_fallthru
      _
    %152 = vsyncpa [#allocation4], 1
    %153 = vsyncpa [#allocation5], 1

</llo_original>
